<compile_context>
chip_gen: v6e
topology: v6e:2x2x1
jax: 0.10.0
libtpu: 0.0.40
codegen_flags: <defaults>
</compile_context>

<pallas_src>
import functools
import math

import jax
import jax.numpy as jnp
from jax.experimental import pallas as pl
from jax.experimental.pallas import tpu as pltpu


def _largest_divisor_at_most(n, target):
    t = min(n, target)
    while n % t:
        t -= 1
    return t


def _pick_cout_tile(cout, target=256):
    if cout <= target:
        return cout
    for t in range(target, 0, -1):
        if cout % t == 0 and t % 8 == 0:
            return t
    return cout


# -------------------------------------------------------------------------
# Kernel 1: DoW composition.
#   D_eff = D + D_diag : (Cin, MN, Dmul)     W_t : (Cin, O, Dmul)
#   out               : (Cin, O, MN),  out[i] = W_t[i] @ D_eff[i].T
# Many channels per grid step (unrolled), instead of one 9x9 matmul per step.
# -------------------------------------------------------------------------
def _dow_kernel(d_ref, w_ref, o_ref, *, cb):
    for i in range(cb):
        o_ref[i] = jax.lax.dot_general(
            w_ref[i], d_ref[i],
            dimension_numbers=(((1,), (1,)), ((), ())),   # contract over Dmul
            preferred_element_type=jnp.float32)


def compute_dow(W, D_eff, out_channels, in_channels, M, N, D_mul, groups=1):
    O_g = out_channels // groups
    MN = M * N
    W_t = jnp.transpose(W.reshape(O_g, in_channels, D_mul), (1, 0, 2))  # (Cin,O,Dmul)

    cb = _largest_divisor_at_most(in_channels, 32)   # channels per grid step
    out = pl.pallas_call(
        functools.partial(_dow_kernel, cb=cb),
        out_shape=jax.ShapeDtypeStruct((in_channels, O_g, MN), jnp.float32),
        grid=(in_channels // cb,),
        in_specs=[
            pl.BlockSpec((cb, MN, D_mul), lambda i: (i, 0, 0)),
            pl.BlockSpec((cb, O_g, D_mul), lambda i: (i, 0, 0)),
        ],
        out_specs=pl.BlockSpec((cb, O_g, MN), lambda i: (i, 0, 0)),
        compiler_params=pltpu.CompilerParams(dimension_semantics=("arbitrary",)),
    )(D_eff, W_t)

    # 'oim' ordering, then reshape to (O, Cin//g, M, N)  (same as torch.reshape)
    return jnp.transpose(out, (1, 0, 2)).reshape(
        out_channels, in_channels // groups, M, N)


# -------------------------------------------------------------------------
# Kernel 2a (stride == 1): fused halo convolution.
#   w_ref : (Cout_tile, KK*Cin)  -- grid-constant, VMEM resident
#   x_ref : (1, Cin, Hp*Wp + tail) -- padded input, flattened spatial, per batch
#   o_ref : (1, Cout_tile, L)  with L = Ho*Wp (extra Wp-Wo garbage cols per row,
#           sliced off in the wrapper).
# Each tap (kh, kw) is the contiguous lane slice [kh*dh*Wp + kw*dw, +L) of the
# flat input; taps are packed into a (KK*Cin, L) VMEM scratch, then a single
# MXU matmul with K = KK*Cin produces the whole output tile in one pass.
# -------------------------------------------------------------------------
def _conv_fused_kernel(w_ref, x_ref, o_ref, p_ref, *, KH, KW, dh, dw, Wp, L, Cin):
    for kh in range(KH):
        for kw in range(KW):
            k = kh * KW + kw
            off = kh * dh * Wp + kw * dw
            p_ref[k * Cin:(k + 1) * Cin, :] = x_ref[0, :, off:off + L]
    o_ref[0] = jnp.dot(w_ref[...], p_ref[...],
                       preferred_element_type=jnp.float32).astype(o_ref.dtype)


# -------------------------------------------------------------------------
# Kernel 2b (general stride): folded-K im2col matmul.
#   w_ref : (Cout_tile, KK*Cin)    p_ref : (1, KK*Cin, HW)
# -------------------------------------------------------------------------
def _conv_matmul_kernel(w_ref, p_ref, o_ref):
    o_ref[0] = jnp.dot(w_ref[...], p_ref[0],
                       preferred_element_type=jnp.float32).astype(o_ref.dtype)


def conv2d_pallas(x, weight, stride=(1, 1), padding=(1, 1), dilation=(1, 1),
                  compute_dtype=jnp.float32):
    B, Cin, H, W = x.shape
    Cout, Cin_w, KH, KW = weight.shape
    assert Cin_w == Cin
    sh, sw = stride
    ph, pw = padding
    dh, dw = dilation
    Ho = (H + 2 * ph - dh * (KH - 1) - 1) // sh + 1
    Wo = (W + 2 * pw - dw * (KW - 1) - 1) // sw + 1
    KK = KH * KW
    KKC = KK * Cin

    # Fold taps into the contraction: w_flat[o, (kh*KW+kw)*Cin + c] = W[o,c,kh,kw]
    w_flat = jnp.transpose(weight, (0, 2, 3, 1)).reshape(Cout, KKC).astype(compute_dtype)

    co_tile = _pick_cout_tile(Cout)
    n_co = Cout // co_tile

    if sh == 1 and sw == 1:
        # Fused halo path: pad once (no 9x im2col amplification in HBM).
        Hp, Wp = H + 2 * ph, W + 2 * pw
        L = Ho * Wp                      # output cols incl. (Wp-Wo) garbage/row
        tail = (KW - 1) * dw             # keeps the last tap's slice in-bounds
        x_flat = jnp.pad(x, ((0, 0), (0, 0), (ph, ph), (pw, pw))).reshape(B, Cin, Hp * Wp)
        if tail:
            x_flat = jnp.pad(x_flat, ((0, 0), (0, 0), (0, tail)))
        x_flat = x_flat.astype(compute_dtype)
        Lin = Hp * Wp + tail

        kernel = functools.partial(_conv_fused_kernel, KH=KH, KW=KW, dh=dh, dw=dw,
                                   Wp=Wp, L=L, Cin=Cin)
        out = pl.pallas_call(
            kernel,
            out_shape=jax.ShapeDtypeStruct((B, Cout, L), jnp.float32),
            grid=(B, n_co),
            in_specs=[
                pl.BlockSpec((co_tile, KKC), lambda b, c: (c, 0)),     # resident
                pl.BlockSpec((1, Cin, Lin), lambda b, c: (b, 0, 0)),
            ],
            out_specs=pl.BlockSpec((1, co_tile, L), lambda b, c: (b, c, 0)),
            scratch_shapes=[pltpu.VMEM((KKC, L), compute_dtype)],
            compiler_params=pltpu.CompilerParams(
                dimension_semantics=("parallel", "parallel")),
        )(w_flat, x_flat)
        return out.reshape(B, Cout, Ho, Wp)[:, :, :, :Wo]

    # General (strided) fallback: taps folded into K in the wrapper, single
    # matmul + single output write per grid step.
    HW = Ho * Wo
    x_pad = jnp.pad(x, ((0, 0), (0, 0), (ph, ph), (pw, pw)))
    taps = []
    for kh in range(KH):
        for kw in range(KW):
            sl = x_pad[:, :,
                       kh * dh: kh * dh + sh * (Ho - 1) + 1: sh,
                       kw * dw: kw * dw + sw * (Wo - 1) + 1: sw]
            taps.append(sl.reshape(B, Cin, HW))
    patches = jnp.concatenate(taps, axis=1).astype(compute_dtype)    # (B, KK*Cin, HW)

    out = pl.pallas_call(
        _conv_matmul_kernel,
        out_shape=jax.ShapeDtypeStruct((B, Cout, HW), jnp.float32),
        grid=(B, n_co),
        in_specs=[
            pl.BlockSpec((co_tile, KKC), lambda b, c: (c, 0)),
            pl.BlockSpec((1, KKC, HW), lambda b, c: (b, 0, 0)),
        ],
        out_specs=pl.BlockSpec((1, co_tile, HW), lambda b, c: (b, c, 0)),
        compiler_params=pltpu.CompilerParams(
            dimension_semantics=("parallel", "parallel")),
    )(w_flat, patches)
    return out.reshape(B, Cout, Ho, Wo)


# -------------------------------------------------------------------------
# DOConv2d module (JAX/Pallas)
# -------------------------------------------------------------------------
class DOConv2dPallas:
    def __init__(self, in_channels, out_channels, kernel_size=3, D_mul=None,
                 stride=1, padding=1, dilation=1, groups=1, bias=False,
                 simam=False, compute_dtype=jnp.float32, key=None):
        # TODO(synk): groups>1 (DO-DConv/DO-GConv), bias, simam re-weighting of
        # DoW and non-'zeros' padding modes are not implemented (module defaults).
        assert groups == 1 and not bias and not simam
        self.in_channels = in_channels
        self.out_channels = out_channels
        self.kernel_size = (kernel_size, kernel_size)
        self.stride = (stride, stride)
        self.padding = (padding, padding)
        self.dilation = (dilation, dilation)
        self.groups = groups
        self.compute_dtype = compute_dtype

        M, N = self.kernel_size
        self.D_mul = M * N if D_mul is None or M * N <= 1 else D_mul

        if key is None:
            key = jax.random.PRNGKey(0)
        k_w, k_d = jax.random.split(key)

        # W: kaiming_uniform_(a=sqrt(5)) -> Uniform(-1/sqrt(fan_in), 1/sqrt(fan_in))
        fan_in = (in_channels // groups) * self.D_mul
        bound = 1.0 / math.sqrt(fan_in)
        self.W = jax.random.uniform(
            k_w, (out_channels, in_channels // groups, self.D_mul),
            minval=-bound, maxval=bound, dtype=jnp.float32)

        # D is zero-initialized in the module; use small deterministic values so
        # the over-parameterized path is numerically exercised.
        self.D = 0.05 * jax.random.uniform(
            k_d, (in_channels, M * N, self.D_mul),
            minval=-1.0, maxval=1.0, dtype=jnp.float32)

        # D_diag: identity tiled along D_mul (D_mul % (M*N) == 0 in this config).
        eye = jnp.eye(M * N, dtype=jnp.float32)
        reps = self.D_mul // (M * N)
        D_diag = jnp.tile(eye, (1, reps))[None, :, :]
        self.D_diag = jnp.broadcast_to(
            D_diag, (in_channels, M * N, self.D_mul)).astype(jnp.float32)

        # Both D and D_diag are parameters/constants at call time: fold once.
        self.D_eff = self.D + self.D_diag

    def __call__(self, x, compute_dtype=None):
        cd = self.compute_dtype if compute_dtype is None else compute_dtype
        M, N = self.kernel_size
        DoW = compute_dow(self.W, self.D_eff, self.out_channels, self.in_channels,
                          M, N, self.D_mul, self.groups)
        return conv2d_pallas(x, DoW, self.stride, self.padding, self.dilation,
                             compute_dtype=cd)


# -------------------------------------------------------------------------
# Pure-JAX reference (mirrors the PyTorch forward) for validation.
# -------------------------------------------------------------------------
def reference_forward(mod, x):
    M, N = mod.kernel_size
    D_full = mod.D + mod.D_diag
    W_r = mod.W.reshape(mod.out_channels // mod.groups, mod.in_channels, mod.D_mul)
    DoW = jnp.einsum('ims,ois->oim', D_full, W_r).reshape(
        mod.out_channels, mod.in_channels // mod.groups, M, N)
    return jax.lax.conv_general_dilated(
        x, DoW, window_strides=mod.stride,
        padding=((mod.padding[0], mod.padding[0]),
                 (mod.padding[1], mod.padding[1])),
        rhs_dilation=mod.dilation,
        dimension_numbers=('NCHW', 'OIHW', 'NCHW'))


if __name__ == "__main__":
    key = jax.random.PRNGKey(0)
    k_x, k_p = jax.random.split(key)

    B, Cin, H, W = 2, 4, 16, 16
    Cout = 8
    x = jax.random.normal(k_x, (B, Cin, H, W), dtype=jnp.float32)

    # stride-1: fused halo kernel path (f32, tight check)
    mod = DOConv2dPallas(in_channels=Cin, out_channels=Cout, kernel_size=3,
                         stride=1, padding=1, key=k_p)
    out = jax.block_until_ready(mod(x))
    ref = jax.block_until_ready(reference_forward(mod, x))
    assert out.shape == (B, Cout, H, W)
    assert jnp.allclose(out, ref, atol=1e-4, rtol=1e-4), \
        f"f32 max abs err {jnp.max(jnp.abs(out - ref))}"

    # bf16 MXU inputs (v6e/v7x fast path), f32 accumulation (loose check)
    out_bf16 = jax.block_until_ready(mod(x, compute_dtype=jnp.bfloat16))
    assert jnp.allclose(out_bf16, ref, atol=1e-1, rtol=1e-1), \
        f"bf16 max abs err {jnp.max(jnp.abs(out_bf16 - ref))}"

    # stride-2: folded-K im2col fallback kernel path
    mod2 = DOConv2dPallas(in_channels=Cin, out_channels=Cout, kernel_size=3,
                          stride=2, padding=1, key=k_p)
    out2 = jax.block_until_ready(mod2(x))
    ref2 = jax.block_until_ready(reference_forward(mod2, x))
    assert out2.shape == ref2.shape
    assert jnp.allclose(out2, ref2, atol=1e-4, rtol=1e-4), \
        f"stride-2 max abs err {jnp.max(jnp.abs(out2 - ref2))}"

    print("KERNEL_OK")
</pallas_src>

<mosaic_0001>
module attributes {stable_mosaic.version = 11 : i64} {
  func.func @_dow_kernel(%arg0: i32, %arg1: memref<4x9x9xf32, #tpu.memory_space<vmem>>, %arg2: memref<4x8x9xf32, #tpu.memory_space<vmem>>, %arg3: memref<4x8x9xf32, #tpu.memory_space<vmem>>) attributes {dimension_semantics = [#tpu.dimension_semantics<arbitrary>], iteration_bounds = array<i64: 1>, scalar_prefetch = 0 : i64, scratch_operands = 0 : i64, tpu.core_type = #tpu.core_type<tc>, window_params = [{transform_indices = @transform_0, window_bounds = array<i64: 4, 9, 9>}, {transform_indices = @transform_1, window_bounds = array<i64: 4, 8, 9>}, {transform_indices = @transform_2, window_bounds = array<i64: 4, 8, 9>}]} {
    %c0 = arith.constant 0 : index
    %c0_0 = arith.constant 0 : index
    %c0_1 = arith.constant 0 : index
    %0 = vector.load %arg2[%c0, %c0_0, %c0_1] : memref<4x8x9xf32, #tpu.memory_space<vmem>>, vector<1x8x9xf32>
    %1 = vector.shape_cast %0 : vector<1x8x9xf32> to vector<8x9xf32>
    %c0_2 = arith.constant 0 : index
    %c0_3 = arith.constant 0 : index
    %c0_4 = arith.constant 0 : index
    %2 = vector.load %arg1[%c0_2, %c0_3, %c0_4] : memref<4x9x9xf32, #tpu.memory_space<vmem>>, vector<1x9x9xf32>
    %3 = vector.shape_cast %2 : vector<1x9x9xf32> to vector<9x9xf32>
    %cst = arith.constant dense<0.000000e+00> : vector<8x9xf32>
    %4 = tpu.matmul %1, %3, %cst {dimension_numbers = #tpu.dot_dimension_numbers<[1], [1], [0], [0], [0, 0, 1, 0], [], []>} : vector<8x9xf32>, vector<9x9xf32>, vector<8x9xf32> -> vector<8x9xf32>
    %c0_5 = arith.constant 0 : index
    %c0_6 = arith.constant 0 : index
    %c0_7 = arith.constant 0 : index
    %5 = vector.load %arg3[%c0_5, %c0_6, %c0_7] : memref<4x8x9xf32, #tpu.memory_space<vmem>>, vector<1x8x9xf32>
    %6 = vector.shape_cast %5 : vector<1x8x9xf32> to vector<8x9xf32>
    %7 = vector.shape_cast %4 : vector<8x9xf32> to vector<1x8x9xf32>
    tpu.vector_store %arg3[%c0_5, %c0_6, %c0_7], %7 {strides = array<i32>} : memref<4x8x9xf32, #tpu.memory_space<vmem>>, vector<1x8x9xf32>,
    %c1 = arith.constant 1 : index
    %c0_8 = arith.constant 0 : index
    %c0_9 = arith.constant 0 : index
    %8 = vector.load %arg2[%c1, %c0_8, %c0_9] : memref<4x8x9xf32, #tpu.memory_space<vmem>>, vector<1x8x9xf32>
    %9 = vector.shape_cast %8 : vector<1x8x9xf32> to vector<8x9xf32>
    %c1_10 = arith.constant 1 : index
    %c0_11 = arith.constant 0 : index
    %c0_12 = arith.constant 0 : index
    %10 = vector.load %arg1[%c1_10, %c0_11, %c0_12] : memref<4x9x9xf32, #tpu.memory_space<vmem>>, vector<1x9x9xf32>
    %11 = vector.shape_cast %10 : vector<1x9x9xf32> to vector<9x9xf32>
    %cst_13 = arith.constant dense<0.000000e+00> : vector<8x9xf32>
    %12 = tpu.matmul %9, %11, %cst_13 {dimension_numbers = #tpu.dot_dimension_numbers<[1], [1], [0], [0], [0, 0, 1, 0], [], []>} : vector<8x9xf32>, vector<9x9xf32>, vector<8x9xf32> -> vector<8x9xf32>
    %c1_14 = arith.constant 1 : index
    %c0_15 = arith.constant 0 : index
    %c0_16 = arith.constant 0 : index
    %13 = vector.load %arg3[%c1_14, %c0_15, %c0_16] : memref<4x8x9xf32, #tpu.memory_space<vmem>>, vector<1x8x9xf32>
    %14 = vector.shape_cast %13 : vector<1x8x9xf32> to vector<8x9xf32>
    %15 = vector.shape_cast %12 : vector<8x9xf32> to vector<1x8x9xf32>
    tpu.vector_store %arg3[%c1_14, %c0_15, %c0_16], %15 {strides = array<i32>} : memref<4x8x9xf32, #tpu.memory_space<vmem>>, vector<1x8x9xf32>,
    %c2 = arith.constant 2 : index
    %c0_17 = arith.constant 0 : index
    %c0_18 = arith.constant 0 : index
    %16 = vector.load %arg2[%c2, %c0_17, %c0_18] : memref<4x8x9xf32, #tpu.memory_space<vmem>>, vector<1x8x9xf32>
    %17 = vector.shape_cast %16 : vector<1x8x9xf32> to vector<8x9xf32>
    %c2_19 = arith.constant 2 : index
    %c0_20 = arith.constant 0 : index
    %c0_21 = arith.constant 0 : index
    %18 = vector.load %arg1[%c2_19, %c0_20, %c0_21] : memref<4x9x9xf32, #tpu.memory_space<vmem>>, vector<1x9x9xf32>
    %19 = vector.shape_cast %18 : vector<1x9x9xf32> to vector<9x9xf32>
    %cst_22 = arith.constant dense<0.000000e+00> : vector<8x9xf32>
    %20 = tpu.matmul %17, %19, %cst_22 {dimension_numbers = #tpu.dot_dimension_numbers<[1], [1], [0], [0], [0, 0, 1, 0], [], []>} : vector<8x9xf32>, vector<9x9xf32>, vector<8x9xf32> -> vector<8x9xf32>
    %c2_23 = arith.constant 2 : index
    %c0_24 = arith.constant 0 : index
    %c0_25 = arith.constant 0 : index
    %21 = vector.load %arg3[%c2_23, %c0_24, %c0_25] : memref<4x8x9xf32, #tpu.memory_space<vmem>>, vector<1x8x9xf32>
    %22 = vector.shape_cast %21 : vector<1x8x9xf32> to vector<8x9xf32>
    %23 = vector.shape_cast %20 : vector<8x9xf32> to vector<1x8x9xf32>
    tpu.vector_store %arg3[%c2_23, %c0_24, %c0_25], %23 {strides = array<i32>} : memref<4x8x9xf32, #tpu.memory_space<vmem>>, vector<1x8x9xf32>,
    %c3 = arith.constant 3 : index
    %c0_26 = arith.constant 0 : index
    %c0_27 = arith.constant 0 : index
    %24 = vector.load %arg2[%c3, %c0_26, %c0_27] : memref<4x8x9xf32, #tpu.memory_space<vmem>>, vector<1x8x9xf32>
    %25 = vector.shape_cast %24 : vector<1x8x9xf32> to vector<8x9xf32>
    %c3_28 = arith.constant 3 : index
    %c0_29 = arith.constant 0 : index
    %c0_30 = arith.constant 0 : index
    %26 = vector.load %arg1[%c3_28, %c0_29, %c0_30] : memref<4x9x9xf32, #tpu.memory_space<vmem>>, vector<1x9x9xf32>
    %27 = vector.shape_cast %26 : vector<1x9x9xf32> to vector<9x9xf32>
    %cst_31 = arith.constant dense<0.000000e+00> : vector<8x9xf32>
    %28 = tpu.matmul %25, %27, %cst_31 {dimension_numbers = #tpu.dot_dimension_numbers<[1], [1], [0], [0], [0, 0, 1, 0], [], []>} : vector<8x9xf32>, vector<9x9xf32>, vector<8x9xf32> -> vector<8x9xf32>
    %c3_32 = arith.constant 3 : index
    %c0_33 = arith.constant 0 : index
    %c0_34 = arith.constant 0 : index
    %29 = vector.load %arg3[%c3_32, %c0_33, %c0_34] : memref<4x8x9xf32, #tpu.memory_space<vmem>>, vector<1x8x9xf32>
    %30 = vector.shape_cast %29 : vector<1x8x9xf32> to vector<8x9xf32>
    %31 = vector.shape_cast %28 : vector<8x9xf32> to vector<1x8x9xf32>
    tpu.vector_store %arg3[%c3_32, %c0_33, %c0_34], %31 {strides = array<i32>} : memref<4x8x9xf32, #tpu.memory_space<vmem>>, vector<1x8x9xf32>,
    return
  }
  func.func @transform_0(%arg0: i32) -> (i32, i32, i32) {
    %c0_i32 = arith.constant 0 : i32
    %c0_i32_0 = arith.constant 0 : i32
    %c0_i32_1 = arith.constant 0 : i32
    return %arg0, %c0_i32, %c0_i32_0 : i32, i32, i32
  }
  func.func @transform_1(%arg0: i32) -> (i32, i32, i32) {
    %c0_i32 = arith.constant 0 : i32
    %c0_i32_0 = arith.constant 0 : i32
    %c0_i32_1 = arith.constant 0 : i32
    return %arg0, %c0_i32, %c0_i32_0 : i32, i32, i32
  }
  func.func @transform_2(%arg0: i32) -> (i32, i32, i32) {
    %c0_i32 = arith.constant 0 : i32
    %c0_i32_0 = arith.constant 0 : i32
    %c0_i32_1 = arith.constant 0 : i32
    return %arg0, %c0_i32, %c0_i32_0 : i32, i32, i32
  }
}

</mosaic_0001>

<llo_original>
// kernel: tpu_custom_call.1
$region0: #{tpu_custom_call.1}
  #allocation0 [shape = 'u32[]', space=smem, size = 0x4, offset = 0x4, fixed_abs, tag = 'smem constant byte address 0x4 - core index']
  #allocation1 [shape = 'u32[144,128]{1,0:T(1,128)}', space=vmem, size = 0x12000, scoped, tag = 'internal scratch']
  %s0 = inlined_call_operand.vmem [shape: f32[4,9,9], index: 0, kind: input, shape index: {}]
  %s1 = inlined_call_operand.vmem [shape: f32[4,8,9], index: 1, kind: input, shape index: {}]
  %s2 = inlined_call_operand.hbm [shape: f32[4,8,9], index: 2, kind: output, shape index: {}]
  %s3 = sld [smem:[#allocation0]]
  $region18: #{tpu_custom_call.1} parent=0
    _
  %s5 = ssub.s32 1, %s3
  %s6 = scalar_select 0, %s5, %s3
  $region1: #{tpu_custom_call.1} parent=0
    #allocation2 [shape = 'u8[16384]{0}', space=vmem, size = 0x4000, scoped, tag = 'output window, operand 0, single buffered']
    #allocation3 [shape = 's32[1]{0}', space=sflag, size = 0x4, scoped, tag = 'scoped memory for tpu_custom_call.1']
    %7 = vsyncpa [#allocation3], 0
    // Predicated region
    $region2: #{tpu_custom_call.1} parent=1 // pred_check
      _
    $region3: #{tpu_custom_call.1} parent=1 // pred_check_branch
      %9 = sbr.rel (0) target = $region5
    $region4: #{tpu_custom_call.1} parent=1 // pred_region
      _
    $region5: #{tpu_custom_call.1} parent=1 // pred_fallthru
      _
    // Predicated region
    $region6: #{tpu_custom_call.1} parent=1 // pred_check
      _
    $region7: #{tpu_custom_call.1} parent=1 // pred_check_branch
      %11 = sbr.rel (0) target = $region9
    $region8: #{tpu_custom_call.1} parent=1 // pred_region
      _
    $region9: #{tpu_custom_call.1} parent=1 // pred_fallthru
      _
    %v12 = vld [vmem:[%s1] sm:$0xff]
    %v13 = vld [vmem:[%s0] sm:$0xff]
    %v14 = vld [vmem:[%s0 + $0x8] sm:$0x1]
    %vm15 = vcmask 72704
    %v17 = vsel %vm15, %v12, 0
    %v20 = vsel %vm15, %v13, 0
    %v23 = vsel %vm15, %v14, 0
    %25 = vmatprep.subr.mxu0 0.0
    %26 = vmatpush1.xpose.msra.mxu0 0.0
    %27 = vmatprep.subr.mxu0 0.0
    %28 = vmatpush1.xpose.msra.mxu0 0.0
    %29 = vmatprep.subr.mxu0 0.0
    %30 = vmatpush1.xpose.msra.mxu0 0.0
    %31 = vmatprep.subr.mxu0 0.0
    %32 = vmatpush1.xpose.msra.mxu0 0.0
    %33 = vmatprep.subr.mxu0 0.0
    %34 = vmatpush1.xpose.msra.mxu0 0.0
    %35 = vmatprep.subr.mxu0 0.0
    %36 = vmatpush1.xpose.msra.mxu0 0.0
    %37 = vmatprep.subr.mxu0 0.0
    %38 = vmatpush1.xpose.msra.mxu0 0.0
    %39 = vmatprep.subr.mxu0 0.0
    %40 = vmatpush1.xpose.msra.mxu0 0.0
    %41 = vmatprep.subr.mxu0 0.0
    %42 = vmatpush1.xpose.msra.mxu0 0.0
    %43 = vmatprep.subr.mxu0 0.0
    %44 = vmatpush1.xpose.msra.mxu0 0.0
    %45 = vmatprep.subr.mxu0 0.0
    %46 = vmatpush1.xpose.msra.mxu0 0.0
    %47 = vmatprep.subr.mxu0 0.0
    %48 = vmatpush1.xpose.msra.mxu0 0.0
    %49 = vmatprep.subr.mxu0 0.0
    %50 = vmatpush1.xpose.msra.mxu0 0.0
    %51 = vmatprep.subr.mxu0 0.0
    %52 = vmatpush1.xpose.msra.mxu0 0.0
    %53 = vmatprep.subr.mxu0 0.0
    %54 = vmatpush1.xpose.msra.mxu0 %v23
    %55 = vmatprep.subr.mxu0 0.0
    %56 = vmatpush1.xpose.msra.mxu0 %v20
    %57 = vmatprep.subr.mxu0 0.0
    %58 = vmatpush2.xpose.msra.mxu0 0.0
    %59 = vmatprep.subr.mxu0 0.0
    %60 = vmatpush2.xpose.msra.mxu0 0.0
    %61 = vmatprep.subr.mxu0 0.0
    %62 = vmatpush2.xpose.msra.mxu0 0.0
    %63 = vmatprep.subr.mxu0 0.0
    %64 = vmatpush2.xpose.msra.mxu0 0.0
    %65 = vmatprep.subr.mxu0 0.0
    %66 = vmatpush2.xpose.msra.mxu0 0.0
    %67 = vmatprep.subr.mxu0 0.0
    %68 = vmatpush2.xpose.msra.mxu0 0.0
    %69 = vmatprep.subr.mxu0 0.0
    %70 = vmatpush2.xpose.msra.mxu0 0.0
    %71 = vmatprep.subr.mxu0 0.0
    %72 = vmatpush2.xpose.msra.mxu0 0.0
    %73 = vmatprep.subr.mxu0 0.0
    %74 = vmatpush2.xpose.msra.mxu0 0.0
    %75 = vmatprep.subr.mxu0 0.0
    %76 = vmatpush2.xpose.msra.mxu0 0.0
    %77 = vmatprep.subr.mxu0 0.0
    %78 = vmatpush2.xpose.msra.mxu0 0.0
    %79 = vmatprep.subr.mxu0 0.0
    %80 = vmatpush2.xpose.msra.mxu0 0.0
    %81 = vmatprep.subr.mxu0 0.0
    %82 = vmatpush2.xpose.msra.mxu0 0.0
    %83 = vmatprep.subr.mxu0 0.0
    %84 = vmatpush2.xpose.msra.mxu0 0.0
    %85 = vmatprep.subr.mxu0 0.0
    %86 = vmatpush2.xpose.msra.mxu0 0.0
    %87 = vmatprep.subr.mxu0 0.0
    %88 = vmatpush2.xpose.msra.mxu0 0.0
    %89 = vmatprep.mubr.f32.mxu0 0.0
    %90 = vmatmul.mubr.f32.gmra.mxu0 %v17
    %v91 = vpop.f32.mrf.mxu0
    %v92 = vadd.f32 0.0, %v91
    %v93 = vpop.f32.mrf.mxu0
    %94 = vdwg.mxu0
    %95 = vst.msk [vmem:[#allocation2] sm:$0xff] %vm15, %v92
    %s96 = scalar_lea.vmem %s1, 8
    %v97 = vld [vmem:[%s96] sm:$0xff]
    %s98 = scalar_lea.vmem %s0, 16
    %v99 = vld [vmem:[%s98] sm:$0xff]
    %v100 = vld [vmem:[%s98 + $0x8] sm:$0x1]
    %v102 = vsel %vm15, %v97, 0
    %v105 = vsel %vm15, %v99, 0
    %v108 = vsel %vm15, %v100, 0
    %110 = vmatprep.subr.mxu0 0.0
    %111 = vmatpush1.xpose.msra.mxu0 0.0
    %112 = vmatprep.subr.mxu0 0.0
    %113 = vmatpush1.xpose.msra.mxu0 0.0
    %114 = vmatprep.subr.mxu0 0.0
    %115 = vmatpush1.xpose.msra.mxu0 0.0
    %116 = vmatprep.subr.mxu0 0.0
    %117 = vmatpush1.xpose.msra.mxu0 0.0
    %118 = vmatprep.subr.mxu0 0.0
    %119 = vmatpush1.xpose.msra.mxu0 0.0
    %120 = vmatprep.subr.mxu0 0.0
    %121 = vmatpush1.xpose.msra.mxu0 0.0
    %122 = vmatprep.subr.mxu0 0.0
    %123 = vmatpush1.xpose.msra.mxu0 0.0
    %124 = vmatprep.subr.mxu0 0.0
    %125 = vmatpush1.xpose.msra.mxu0 0.0
    %126 = vmatprep.subr.mxu0 0.0
    %127 = vmatpush1.xpose.msra.mxu0 0.0
    %128 = vmatprep.subr.mxu0 0.0
    %129 = vmatpush1.xpose.msra.mxu0 0.0
    %130 = vmatprep.subr.mxu0 0.0
    %131 = vmatpush1.xpose.msra.mxu0 0.0
    %132 = vmatprep.subr.mxu0 0.0
    %133 = vmatpush1.xpose.msra.mxu0 0.0
    %134 = vmatprep.subr.mxu0 0.0
    %135 = vmatpush1.xpose.msra.mxu0 0.0
    %136 = vmatprep.subr.mxu0 0.0
    %137 = vmatpush1.xpose.msra.mxu0 0.0
    %138 = vmatprep.subr.mxu0 0.0
    %139 = vmatpush1.xpose.msra.mxu0 %v108
    %140 = vmatprep.subr.mxu0 0.0
    %141 = vmatpush1.xpose.msra.mxu0 %v105
    %142 = vmatprep.subr.mxu0 0.0
    %143 = vmatpush2.xpose.msra.mxu0 0.0
    %144 = vmatprep.subr.mxu0 0.0
    %145 = vmatpush2.xpose.msra.mxu0 0.0
    %146 = vmatprep.subr.mxu0 0.0
    %147 = vmatpush2.xpose.msra.mxu0 0.0
    %148 = vmatprep.subr.mxu0 0.0
    %149 = vmatpush2.xpose.msra.mxu0 0.0
    %150 = vmatprep.subr.mxu0 0.0
    %151 = vmatpush2.xpose.msra.mxu0 0.0
    %152 = vmatprep.subr.mxu0 0.0
    %153 = vmatpush2.xpose.msra.mxu0 0.0
    %154 = vmatprep.subr.mxu0 0.0
    %155 = vmatpush2.xpose.msra.mxu0 0.0
    %156 = vmatprep.subr.mxu0 0.0
    %157 = vmatpush2.xpose.msra.mxu0 0.0
    %158 = vmatprep.subr.mxu0 0.0
    %159 = vmatpush2.xpose.msra.mxu0 0.0
    %160 = vmatprep.subr.mxu0 0.0
    %161 = vmatpush2.xpose.msra.mxu0 0.0
    %162 = vmatprep.subr.mxu0 0.0
    %163 = vmatpush2.xpose.msra.mxu0 0.0
    %164 = vmatprep.subr.mxu0 0.0
    %165 = vmatpush2.xpose.msra.mxu0 0.0
    %166 = vmatprep.subr.mxu0 0.0
    %167 = vmatpush2.xpose.msra.mxu0 0.0
    %168 = vmatprep.subr.mxu0 0.0
    %169 = vmatpush2.xpose.msra.mxu0 0.0
    %170 = vmatprep.subr.mxu0 0.0
    %171 = vmatpush2.xpose.msra.mxu0 0.0
    %172 = vmatprep.subr.mxu0 0.0
    %173 = vmatpush2.xpose.msra.mxu0 0.0
    %174 = vmatprep.mubr.f32.mxu0 0.0
    %175 = vmatmul.mubr.f32.gmra.mxu0 %v102
    %v176 = vpop.f32.mrf.mxu0
    %v177 = vadd.f32 0.0, %v176
    %v178 = vpop.f32.mrf.mxu0
    %179 = vdwg.mxu0
    %s180 = scalar_lea.vmem [#allocation2], 8
    %181 = vst.msk [vmem:[%s180] sm:$0xff] %vm15, %v177
    %s182 = scalar_lea.vmem %s1, 16
    %v183 = vld [vmem:[%s182] sm:$0xff]
    %s184 = scalar_lea.vmem %s0, 32
    %v185 = vld [vmem:[%s184] sm:$0xff]
    %v186 = vld [vmem:[%s184 + $0x8] sm:$0x1]
    %v188 = vsel %vm15, %v183, 0
    %v191 = vsel %vm15, %v185, 0
    %v194 = vsel %vm15, %v186, 0
    %196 = vmatprep.subr.mxu0 0.0
    %197 = vmatpush1.xpose.msra.mxu0 0.0
    %198 = vmatprep.subr.mxu0 0.0
    %199 = vmatpush1.xpose.msra.mxu0 0.0
    %200 = vmatprep.subr.mxu0 0.0
    %201 = vmatpush1.xpose.msra.mxu0 0.0
    %202 = vmatprep.subr.mxu0 0.0
    %203 = vmatpush1.xpose.msra.mxu0 0.0
    %204 = vmatprep.subr.mxu0 0.0
    %205 = vmatpush1.xpose.msra.mxu0 0.0
    %206 = vmatprep.subr.mxu0 0.0
    %207 = vmatpush1.xpose.msra.mxu0 0.0
    %208 = vmatprep.subr.mxu0 0.0
    %209 = vmatpush1.xpose.msra.mxu0 0.0
    %210 = vmatprep.subr.mxu0 0.0
    %211 = vmatpush1.xpose.msra.mxu0 0.0
    %212 = vmatprep.subr.mxu0 0.0
    %213 = vmatpush1.xpose.msra.mxu0 0.0
    %214 = vmatprep.subr.mxu0 0.0
    %215 = vmatpush1.xpose.msra.mxu0 0.0
    %216 = vmatprep.subr.mxu0 0.0
    %217 = vmatpush1.xpose.msra.mxu0 0.0
    %218 = vmatprep.subr.mxu0 0.0
    %219 = vmatpush1.xpose.msra.mxu0 0.0
    %220 = vmatprep.subr.mxu0 0.0
    %221 = vmatpush1.xpose.msra.mxu0 0.0
    %222 = vmatprep.subr.mxu0 0.0
    %223 = vmatpush1.xpose.msra.mxu0 0.0
    %224 = vmatprep.subr.mxu0 0.0
    %225 = vmatpush1.xpose.msra.mxu0 %v194
    %226 = vmatprep.subr.mxu0 0.0
    %227 = vmatpush1.xpose.msra.mxu0 %v191
    %228 = vmatprep.subr.mxu0 0.0
    %229 = vmatpush2.xpose.msra.mxu0 0.0
    %230 = vmatprep.subr.mxu0 0.0
    %231 = vmatpush2.xpose.msra.mxu0 0.0
    %232 = vmatprep.subr.mxu0 0.0
    %233 = vmatpush2.xpose.msra.mxu0 0.0
    %234 = vmatprep.subr.mxu0 0.0
    %235 = vmatpush2.xpose.msra.mxu0 0.0
    %236 = vmatprep.subr.mxu0 0.0
    %237 = vmatpush2.xpose.msra.mxu0 0.0
    %238 = vmatprep.subr.mxu0 0.0
    %239 = vmatpush2.xpose.msra.mxu0 0.0
    %240 = vmatprep.subr.mxu0 0.0
    %241 = vmatpush2.xpose.msra.mxu0 0.0
    %242 = vmatprep.subr.mxu0 0.0
    %243 = vmatpush2.xpose.msra.mxu0 0.0
    %244 = vmatprep.subr.mxu0 0.0
    %245 = vmatpush2.xpose.msra.mxu0 0.0
    %246 = vmatprep.subr.mxu0 0.0
    %247 = vmatpush2.xpose.msra.mxu0 0.0
    %248 = vmatprep.subr.mxu0 0.0
    %249 = vmatpush2.xpose.msra.mxu0 0.0
    %250 = vmatprep.subr.mxu0 0.0
    %251 = vmatpush2.xpose.msra.mxu0 0.0
    %252 = vmatprep.subr.mxu0 0.0
    %253 = vmatpush2.xpose.msra.mxu0 0.0
    %254 = vmatprep.subr.mxu0 0.0
    %255 = vmatpush2.xpose.msra.mxu0 0.0
    %256 = vmatprep.subr.mxu0 0.0
    %257 = vmatpush2.xpose.msra.mxu0 0.0
    %258 = vmatprep.subr.mxu0 0.0
    %259 = vmatpush2.xpose.msra.mxu0 0.0
    %260 = vmatprep.mubr.f32.mxu0 0.0
    %261 = vmatmul.mubr.f32.gmra.mxu0 %v188
    %v262 = vpop.f32.mrf.mxu0
    %v263 = vadd.f32 0.0, %v262
    %v264 = vpop.f32.mrf.mxu0
    %265 = vdwg.mxu0
    %s266 = scalar_lea.vmem [#allocation2], 16
    %267 = vst.msk [vmem:[%s266] sm:$0xff] %vm15, %v263
    %s268 = scalar_lea.vmem %s1, 24
    %v269 = vld [vmem:[%s268] sm:$0xff]
    %s270 = scalar_lea.vmem %s0, 48
    %v271 = vld [vmem:[%s270] sm:$0xff]
    %v272 = vld [vmem:[%s270 + $0x8] sm:$0x1]
    %v274 = vsel %vm15, %v269, 0
    %v277 = vsel %vm15, %v271, 0
    %v280 = vsel %vm15, %v272, 0
    %282 = vmatprep.subr.mxu0 0.0
    %283 = vmatpush1.xpose.msra.mxu0 0.0
    %284 = vmatprep.subr.mxu0 0.0
    %285 = vmatpush1.xpose.msra.mxu0 0.0
    %286 = vmatprep.subr.mxu0 0.0
    %287 = vmatpush1.xpose.msra.mxu0 0.0
    %288 = vmatprep.subr.mxu0 0.0
    %289 = vmatpush1.xpose.msra.mxu0 0.0
    %290 = vmatprep.subr.mxu0 0.0
    %291 = vmatpush1.xpose.msra.mxu0 0.0
    %292 = vmatprep.subr.mxu0 0.0
    %293 = vmatpush1.xpose.msra.mxu0 0.0
    %294 = vmatprep.subr.mxu0 0.0
    %295 = vmatpush1.xpose.msra.mxu0 0.0
    %296 = vmatprep.subr.mxu0 0.0
    %297 = vmatpush1.xpose.msra.mxu0 0.0
    %298 = vmatprep.subr.mxu0 0.0
    %299 = vmatpush1.xpose.msra.mxu0 0.0
    %300 = vmatprep.subr.mxu0 0.0
    %301 = vmatpush1.xpose.msra.mxu0 0.0
    %302 = vmatprep.subr.mxu0 0.0
    %303 = vmatpush1.xpose.msra.mxu0 0.0
    %304 = vmatprep.subr.mxu0 0.0
    %305 = vmatpush1.xpose.msra.mxu0 0.0
    %306 = vmatprep.subr.mxu0 0.0
    %307 = vmatpush1.xpose.msra.mxu0 0.0
    %308 = vmatprep.subr.mxu0 0.0
    %309 = vmatpush1.xpose.msra.mxu0 0.0
    %310 = vmatprep.subr.mxu0 0.0
    %311 = vmatpush1.xpose.msra.mxu0 %v280
    %312 = vmatprep.subr.mxu0 0.0
    %313 = vmatpush1.xpose.msra.mxu0 %v277
    %314 = vmatprep.subr.mxu0 0.0
    %315 = vmatpush2.xpose.msra.mxu0 0.0
    %316 = vmatprep.subr.mxu0 0.0
    %317 = vmatpush2.xpose.msra.mxu0 0.0
    %318 = vmatprep.subr.mxu0 0.0
    %319 = vmatpush2.xpose.msra.mxu0 0.0
    %320 = vmatprep.subr.mxu0 0.0
    %321 = vmatpush2.xpose.msra.mxu0 0.0
    %322 = vmatprep.subr.mxu0 0.0
    %323 = vmatpush2.xpose.msra.mxu0 0.0
    %324 = vmatprep.subr.mxu0 0.0
    %325 = vmatpush2.xpose.msra.mxu0 0.0
    %326 = vmatprep.subr.mxu0 0.0
    %327 = vmatpush2.xpose.msra.mxu0 0.0
    %328 = vmatprep.subr.mxu0 0.0
    %329 = vmatpush2.xpose.msra.mxu0 0.0
    %330 = vmatprep.subr.mxu0 0.0
    %331 = vmatpush2.xpose.msra.mxu0 0.0
    %332 = vmatprep.subr.mxu0 0.0
    %333 = vmatpush2.xpose.msra.mxu0 0.0
    %334 = vmatprep.subr.mxu0 0.0
    %335 = vmatpush2.xpose.msra.mxu0 0.0
    %336 = vmatprep.subr.mxu0 0.0
    %337 = vmatpush2.xpose.msra.mxu0 0.0
    %338 = vmatprep.subr.mxu0 0.0
    %339 = vmatpush2.xpose.msra.mxu0 0.0
    %340 = vmatprep.subr.mxu0 0.0
    %341 = vmatpush2.xpose.msra.mxu0 0.0
    %342 = vmatprep.subr.mxu0 0.0
    %343 = vmatpush2.xpose.msra.mxu0 0.0
    %344 = vmatprep.subr.mxu0 0.0
    %345 = vmatpush2.xpose.msra.mxu0 0.0
    %346 = vmatprep.mubr.f32.mxu0 0.0
    %347 = vmatmul.mubr.f32.gmra.mxu0 %v274
    %v348 = vpop.f32.mrf.mxu0
    %v349 = vadd.f32 0.0, %v348
    %v350 = vpop.f32.mrf.mxu0
    %351 = vdwg.mxu0
    %s352 = scalar_lea.vmem [#allocation2], 24
    %353 = vst.msk [vmem:[%s352] sm:$0xff] %vm15, %v349
    // Predicated region
    $region10: #{tpu_custom_call.1} parent=1 // pred_check
      _
    $region11: #{tpu_custom_call.1} parent=1 // pred_check_branch
      %355 = sbr.rel (0) target = $region13
    $region12: #{tpu_custom_call.1} parent=1 // pred_region
      %s357 = ssub.s32 512, 512
      %358 = vsyncadd [#allocation3], %s357
      %s359 = sshll.u32 [#allocation2], 4
      %s360 = int_to_ptr.vmem [resolvable:$true] %s359
      %365 = dma.vmem_to_hbm [thread:$0]  %s360, 512, %s2, [#allocation3], 128, 128, 8
    $region13: #{tpu_custom_call.1} parent=1 // pred_fallthru
      _
    // Predicated region
    $region14: #{tpu_custom_call.1} parent=1 // pred_check
      _
    $region15: #{tpu_custom_call.1} parent=1 // pred_check_branch
      %367 = sbr.rel (0) target = $region17
    $region16: #{tpu_custom_call.1} parent=1 // pred_region
      %368 = dma.done [#allocation3], 512
    $region17: #{tpu_custom_call.1} parent=1 // pred_fallthru
      _
    %369 = vsyncpa [#allocation3], 1

</llo_original>
